<compile_context>
chip_gen: v6e
topology: v6e:2x2x1
jax: 0.10.0
libtpu: 0.0.40
codegen_flags: <defaults>
</compile_context>

<pallas_src>
import numpy as np

import jax
import jax.numpy as jnp
from jax import lax
from jax.experimental import pallas as pl
from jax.experimental.pallas import tpu as pltpu

LANE = 128
DEF_TILE_ROWS = 256          # row tile; sweep 128..512 per generation (v6e/v5e favor larger)
_FAST_PATH_BYTES = 16 * 1024 * 1024


def _cdiv(a, b):
    return (a + b - 1) // b


def _round_up(x, m):
    return _cdiv(x, m) * m


def _pad2(a, rows, cols, dtype=jnp.float32):
    a = a.astype(dtype)
    return jnp.pad(a, ((0, rows - a.shape[0]), (0, cols - a.shape[1])))


def _vmem_limit_bytes():
    # Per-generation VMEM budget: never request the full physical capacity
    # (v7x has only 64 MiB per TensorCore; v5e/v6e have 128 MiB).
    cap = 128 * 1024 * 1024
    try:
        cap = int(getattr(pltpu.get_tpu_info(), "vmem_capacity_bytes", cap))
    except Exception:
        pass
    return max(32 * 1024 * 1024, min(cap - 16 * 1024 * 1024, 100 * 1024 * 1024))


def _largest_tile(n, candidates):
    for c in candidates:
        if c <= n and n % c == 0:
            return c
    return n


# --------------------------------------------------------------------------- kernels

def _theta_kernel(x_ref, w_ref, b_ref, o_ref):
    # Xt[tile] = X[tile] @ W + b   (stored in the propagation dtype, e.g. bf16)
    o_ref[...] = (
        jnp.dot(x_ref[...], w_ref[...], preferred_element_type=jnp.float32) + b_ref[...]
    ).astype(o_ref.dtype)


def _prop1_theta2_kernel(m_ref, xt1_ref, w2_ref, b2_ref, o_ref, acc_ref):
    # K-tiled layer-1 propagation fused with layer-2 theta:
    #   acc += M[i, k] @ Xt1[k] ;  at last k:  out[i] = ReLU(acc) @ W2 + b2
    k = pl.program_id(1)

    @pl.when(k == 0)
    def _():
        acc_ref[...] = jnp.zeros_like(acc_ref)

    acc_ref[...] += jnp.dot(m_ref[...], xt1_ref[...], preferred_element_type=jnp.float32)

    @pl.when(k == pl.num_programs(1) - 1)
    def _():
        h = jnp.maximum(acc_ref[...], 0.0)
        o_ref[...] = (
            jnp.dot(h, w2_ref[...], preferred_element_type=jnp.float32) + b2_ref[...]
        ).astype(o_ref.dtype)


def _prop2_readout_kernel(msel_ref, xt2_ref, wfc_ref, bfc_ref, o_ref, acc_ref):
    # Layer-2 propagation ONLY for rows of the last hyperedge, fused with the
    # max-pool + Linear(out,1) + Sigmoid readout.  x2 never touches HBM.
    k = pl.program_id(0)

    @pl.when(k == 0)
    def _():
        acc_ref[...] = jnp.zeros_like(acc_ref)

    acc_ref[...] += jnp.dot(msel_ref[...], xt2_ref[...], preferred_element_type=jnp.float32)

    @pl.when(k == pl.num_programs(0) - 1)
    def _():
        x2 = jnp.maximum(acc_ref[...], 0.0)                 # [Sp, Fout_p]
        # Padded rows of M_sel are zero -> those x2 rows are 0; since ReLU output >= 0,
        # they can never win the max, so no mask is needed.
        pooled = jnp.max(x2, axis=0, keepdims=True)         # [1, Fout_p]
        logit = jnp.sum(pooled * wfc_ref[...], axis=-1, keepdims=True) + bfc_ref[...]
        o_ref[...] = (1.0 / (1.0 + jnp.exp(-logit))).astype(o_ref.dtype)


def _fused_small_kernel(x_ref, m_ref, msel_ref, w1_ref, b1_ref, w2_ref, b2_ref,
                        wfc_ref, bfc_ref, o_ref):
    # Small-graph fast path: the entire forward in ONE pallas_call (all operands resident).
    xt1 = jnp.dot(x_ref[...], w1_ref[...], preferred_element_type=jnp.float32) + b1_ref[...]
    h1 = jnp.maximum(jnp.dot(m_ref[...], xt1, preferred_element_type=jnp.float32), 0.0)
    xt2 = jnp.dot(h1, w2_ref[...], preferred_element_type=jnp.float32) + b2_ref[...]
    x2 = jnp.maximum(jnp.dot(msel_ref[...], xt2, preferred_element_type=jnp.float32), 0.0)
    pooled = jnp.max(x2, axis=0, keepdims=True)
    logit = jnp.sum(pooled * wfc_ref[...], axis=-1, keepdims=True) + bfc_ref[...]
    o_ref[...] = (1.0 / (1.0 + jnp.exp(-logit))).astype(o_ref.dtype)


# -------------------------------------------------------------------- pallas_call wrappers

def _tiled_theta(x, w, b, tm, out_dtype, vmem_limit):
    n_p, f_in = x.shape
    f_out = w.shape[1]
    return pl.pallas_call(
        _theta_kernel,
        out_shape=jax.ShapeDtypeStruct((n_p, f_out), out_dtype),
        grid_spec=pltpu.PrefetchScalarGridSpec(
            num_scalar_prefetch=0,
            grid=(n_p // tm,),
            in_specs=[
                pl.BlockSpec((tm, f_in), lambda i: (i, 0)),
                pl.BlockSpec((f_in, f_out), lambda i: (0, 0)),   # W resident
                pl.BlockSpec((1, f_out), lambda i: (0, 0)),      # b resident
            ],
            out_specs=pl.BlockSpec((tm, f_out), lambda i: (i, 0)),
        ),
        compiler_params=pltpu.CompilerParams(
            dimension_semantics=("parallel",), vmem_limit_bytes=vmem_limit),
    )(x, w, b)


def _tiled_prop1_theta2(m, xt1, w2, b2, tm, tk, out_dtype, vmem_limit):
    n_p = m.shape[0]
    f_h = xt1.shape[1]
    f_out = w2.shape[1]
    # TODO(synk): on v7x consider pipeline_mode=pl.Buffered(3) on the M BlockSpec
    # (HBM-bound bf16 stream) once confirmed supported on the deployed JAX build.
    return pl.pallas_call(
        _prop1_theta2_kernel,
        out_shape=jax.ShapeDtypeStruct((n_p, f_out), out_dtype),
        grid_spec=pltpu.PrefetchScalarGridSpec(
            num_scalar_prefetch=0,
            grid=(n_p // tm, n_p // tk),
            in_specs=[
                pl.BlockSpec((tm, tk), lambda i, k: (i, k)),      # M row x K tile (bf16)
                pl.BlockSpec((tk, f_h), lambda i, k: (k, 0)),     # Xt1 K tile (bf16)
                pl.BlockSpec((f_h, f_out), lambda i, k: (0, 0)),  # W2 resident (f32)
                pl.BlockSpec((1, f_out), lambda i, k: (0, 0)),    # b2 resident
            ],
            out_specs=pl.BlockSpec((tm, f_out), lambda i, k: (i, 0)),
            scratch_shapes=[pltpu.VMEM((tm, f_h), jnp.float32)],  # f32 accumulator
        ),
        compiler_params=pltpu.CompilerParams(
            dimension_semantics=("parallel", "arbitrary"), vmem_limit_bytes=vmem_limit),
    )(m, xt1, w2, b2)


def _prop2_readout(m_sel, xt2, wfc_row, bfc, tk, vmem_limit):
    s_p, n_p = m_sel.shape
    f_out = xt2.shape[1]
    return pl.pallas_call(
        _prop2_readout_kernel,
        out_shape=jax.ShapeDtypeStruct((1, 1), jnp.float32),
        grid_spec=pltpu.PrefetchScalarGridSpec(
            num_scalar_prefetch=0,
            grid=(n_p // tk,),
            in_specs=[
                pl.BlockSpec((s_p, tk), lambda k: (0, k)),        # M_sel K tile (bf16)
                pl.BlockSpec((tk, f_out), lambda k: (k, 0)),      # Xt2 K tile (bf16)
                pl.BlockSpec((1, f_out), lambda k: (0, 0)),       # Wfc resident
                pl.BlockSpec((1, 1), lambda k: (0, 0)),           # bfc resident
            ],
            out_specs=pl.BlockSpec((1, 1), lambda k: (0, 0)),
            scratch_shapes=[pltpu.VMEM((s_p, f_out), jnp.float32)],
        ),
        compiler_params=pltpu.CompilerParams(
            dimension_semantics=("arbitrary",), vmem_limit_bytes=vmem_limit),
    )(m_sel, xt2, wfc_row, bfc)


def _fused_small(xp, mp, mselp, w1p, b1p, w2p, b2p, wfc_row, bfc_p, vmem_limit):
    args = (xp, mp, mselp, w1p, b1p, w2p, b2p, wfc_row, bfc_p)
    return pl.pallas_call(
        _fused_small_kernel,
        out_shape=jax.ShapeDtypeStruct((1, 1), jnp.float32),
        grid_spec=pltpu.PrefetchScalarGridSpec(
            num_scalar_prefetch=0,
            grid=(1,),
            in_specs=[pl.BlockSpec(a.shape, lambda i: (0, 0)) for a in args],
            out_specs=pl.BlockSpec((1, 1), lambda i: (0, 0)),
        ),
        compiler_params=pltpu.CompilerParams(
            dimension_semantics=("arbitrary",), vmem_limit_bytes=vmem_limit),
    )(*args)


# --------------------------------------------------------------------------- forward

def gcn_hgnn_forward(X, W1, b1, W2, b2, Wfc, bfc, A, H, edge_nodes=None,
                     tm=DEF_TILE_ROWS, prop_dtype=jnp.bfloat16, path="auto"):
    """GCN_HGNN.forward.

    A: dense undirected adjacency [N, N].  H: hyperedge incidence [N, E]
    (last column = readout hyperedge).  edge_nodes: optional host-side list of
    node ids of the last hyperedge (mirrors dhg's hg.e[0][-1]); derived from H if None.
    """
    N, Fin = X.shape
    Fh = W1.shape[1]
    Fout = W2.shape[1]

    # ---- structural precompute (glue JAX; dhg caches these per graph) ----
    A_hat = A.astype(jnp.float32) + jnp.eye(N, dtype=jnp.float32)
    d = jnp.sum(A_hat, axis=1)
    d_isqrt = jnp.where(d > 0, lax.rsqrt(d), 0.0)
    L_gcn = d_isqrt[:, None] * A_hat * d_isqrt[None, :]

    H1 = H.astype(jnp.float32)[:, :-1]            # hg1 = Hypergraph(..., hg.e[0][:-1])
    Dv = jnp.sum(H1, axis=1)
    De = jnp.sum(H1, axis=0)
    Dv_isqrt = jnp.where(Dv > 0, lax.rsqrt(Dv), 0.0)
    De_inv = jnp.where(De > 0, 1.0 / De, 0.0)
    L_hg = (Dv_isqrt[:, None] * H1 * De_inv[None, :]) @ (H1.T * Dv_isqrt[None, :])

    # Fused propagation matrix: (L_GCN@Xt + L_HGNN@Xt)/2 == M @ Xt (one matmul, not two)
    M = 0.5 * (L_gcn + L_hg)

    # last-hyperedge node ids (host-side static structure, like dhg's python edge list)
    if edge_nodes is None:
        edge_nodes = np.nonzero(np.asarray(H)[:, -1] > 0)[0]
    edge_nodes = np.asarray(edge_nodes, dtype=np.int32).reshape(-1)
    # TODO(synk): an empty last hyperedge makes the torch reference produce -inf/NaN;
    # we assume it is non-empty (always true for dhg readout edges).
    S = int(edge_nodes.shape[0])
    Sp = _round_up(max(S, 1), 8)
    if S > 0:
        M_sel = M[jnp.asarray(edge_nodes), :]              # [S, N] — only rows ever read by the FC
    else:
        M_sel = jnp.zeros((1, N), jnp.float32)

    Fin_p = _round_up(Fin, LANE)
    Fh_p = _round_up(Fh, LANE)
    Fout_p = _round_up(Fout, LANE)

    W1p = _pad2(W1, Fin_p, Fh_p)
    b1p = _pad2(jnp.reshape(b1, (1, -1)), 1, Fh_p)
    W2p = _pad2(W2, Fh_p, Fout_p)
    b2p = _pad2(jnp.reshape(b2, (1, -1)), 1, Fout_p)
    Wfc_row = _pad2(jnp.reshape(Wfc, (1, -1)), 1, Fout_p)
    bfc_p = jnp.reshape(bfc, (1, 1)).astype(jnp.float32)

    vmem_limit = _vmem_limit_bytes()

    # ---- small-graph fast path: one fused kernel, everything VMEM-resident (f32) ----
    Nf = _round_up(N, 8)
    fast_bytes = 4 * (Nf * Fin_p + Nf * Nf + Sp * Nf + Fin_p * Fh_p + Fh_p * Fout_p
                      + Nf * Fh_p + Nf * Fout_p + Sp * Fout_p + 4 * Fout_p + Fh_p)
    fast_thresh = min(_FAST_PATH_BYTES, vmem_limit // 3)
    use_fast = (path == "fused") or (path == "auto" and fast_bytes < fast_thresh)

    if use_fast:
        # TODO(synk): nn.Dropout(drop_rate) is identity here (eval-mode / deterministic run).
        Xp = _pad2(X, Nf, Fin_p)
        Mp = _pad2(M, Nf, Nf)
        Mselp = _pad2(M_sel, Sp, Nf)
        return _fused_small(Xp, Mp, Mselp, W1p, b1p, W2p, b2p, Wfc_row, bfc_p, vmem_limit)

    # ---- large-graph tiled path ----
    # row tile: keep >= 2 tiles (and an even tile count) so both v7x TCs get work
    while tm > 128 and _cdiv(N, tm) < 2:
        tm //= 2
    n_tiles = _cdiv(N, tm)
    if n_tiles > 1 and n_tiles % 2 == 1:
        n_tiles += 1
    Np = n_tiles * tm

    tk = _largest_tile(Np, (512, 256, 128))                 # K tile of the N^2 propagation
    tk2 = _largest_tile(Np, (2048, 1024, 512, 256, 128))    # K tile of the |e_last| x N prop

    Xp = _pad2(X, Np, Fin_p)
    # bf16 halves the dominant N^2 HBM stream of M and the Xt streams; f32 MXU accumulation
    # (preferred_element_type) keeps results close to the f32 torch reference.
    Mp = _pad2(M, Np, Np, dtype=prop_dtype)
    Mselp = _pad2(M_sel, Sp, Np, dtype=prop_dtype)

    # theta_1: X @ W1 + b1 (output stored directly in the propagation dtype)
    Xt1 = _tiled_theta(Xp, W1p, b1p, tm, prop_dtype, vmem_limit)
    # layer-1 propagation fused with layer-2 theta; K-tiled so VMEM is bounded vs N
    Xt2 = _tiled_prop1_theta2(Mp, Xt1, W2p, b2p, tm, tk, prop_dtype, vmem_limit)
    # layer-2 propagation ONLY for the last hyperedge's rows, fused with max-pool + FC + sigmoid
    return _prop2_readout(Mselp, Xt2, Wfc_row, bfc_p, tk2, vmem_limit)   # [1, 1]


# --------------------------------------------------------------------------- reference

def _reference_forward(X, W1, b1, W2, b2, Wfc, bfc, A, H):
    N = X.shape[0]
    A_hat = A + jnp.eye(N, dtype=jnp.float32)
    d = jnp.sum(A_hat, axis=1)
    dis = jnp.where(d > 0, 1.0 / jnp.sqrt(d), 0.0)
    L_gcn = dis[:, None] * A_hat * dis[None, :]

    H1 = H[:, :-1]
    Dv = jnp.sum(H1, axis=1)
    De = jnp.sum(H1, axis=0)
    Dvi = jnp.where(Dv > 0, 1.0 / jnp.sqrt(Dv), 0.0)
    Dei = jnp.where(De > 0, 1.0 / De, 0.0)
    L_hg = (Dvi[:, None] * H1 * Dei[None, :]) @ (H1.T * Dvi[None, :])

    def conv(x, W, b):
        xt = x @ W + b[None, :]
        return jax.nn.relu(0.5 * (L_gcn @ xt + L_hg @ xt))

    x1 = conv(X, W1, b1)
    x2 = conv(x1, W2, b2)
    sel = (H[:, -1] > 0)[:, None]
    edge_x = jnp.max(jnp.where(sel, x2, -jnp.inf), axis=0)
    logit = jnp.sum(edge_x * jnp.reshape(Wfc, (-1,))) + jnp.reshape(bfc, ())
    return jax.nn.sigmoid(logit).reshape(1, 1)


# --------------------------------------------------------------------------- demo

if __name__ == "__main__":
    N, C_IN, C_H, C_OUT, E = 200, 24, 48, 20, 12   # odd sizes -> exercises padding paths

    key = jax.random.PRNGKey(0)
    ks = jax.random.split(key, 7)
    X = jax.random.normal(ks[0], (N, C_IN), jnp.float32)
    W1 = jax.random.normal(ks[1], (C_IN, C_H), jnp.float32) / jnp.sqrt(C_IN)
    b1 = jax.random.normal(ks[2], (C_H,), jnp.float32) * 0.1
    W2 = jax.random.normal(ks[3], (C_H, C_OUT), jnp.float32) / jnp.sqrt(C_H)
    b2 = jax.random.normal(ks[4], (C_OUT,), jnp.float32) * 0.1
    Wfc = jax.random.normal(ks[5], (1, C_OUT), jnp.float32) / jnp.sqrt(C_OUT)  # torch Linear layout
    bfc = jax.random.normal(ks[6], (1,), jnp.float32) * 0.1

    # deterministic synthetic undirected graph: ring + chords, symmetrized
    A_np = np.zeros((N, N), np.float32)
    idx = np.arange(N)
    for off in (1, 7, 23):
        A_np[idx, (idx + off) % N] = 1.0
    A_np = np.maximum(A_np, A_np.T)
    A = jnp.asarray(A_np)

    # deterministic synthetic hypergraph incidence H [N, E]; last column = readout hyperedge
    H_np = np.zeros((N, E), np.float32)
    for j in range(E):
        for kk in range(9):
            H_np[(17 * j + 3 * kk) % N, j] = 1.0
    H = jnp.asarray(H_np)

    ref = _reference_forward(X, W1, b1, W2, b2, Wfc, bfc, A, H)

    # small-graph fast path (single fused kernel, f32) -- what "auto" picks at this size
    out_fast = gcn_hgnn_forward(X, W1, b1, W2, b2, Wfc, bfc, A, H, path="fused")
    jax.block_until_ready(out_fast)
    assert out_fast.shape == (1, 1)
    np.testing.assert_allclose(np.asarray(out_fast), np.asarray(ref), atol=1e-3, rtol=1e-3)

    # large-graph tiled path (forced here to exercise it; bf16 M/Xt streams, f32 accumulation)
    out_tiled = gcn_hgnn_forward(X, W1, b1, W2, b2, Wfc, bfc, A, H, path="tiled", tm=128)
    jax.block_until_ready(out_tiled)
    assert out_tiled.shape == (1, 1)
    np.testing.assert_allclose(np.asarray(out_tiled), np.asarray(ref), atol=2e-2, rtol=2e-2)

    print("KERNEL_OK")
</pallas_src>

<mosaic_0001>
module attributes {stable_mosaic.version = 11 : i64} {
  func.func @_fused_small_kernel(%arg0: i32, %arg1: memref<200x128xf32, #tpu.memory_space<vmem>>, %arg2: memref<200x200xf32, #tpu.memory_space<vmem>>, %arg3: memref<16x200xf32, #tpu.memory_space<vmem>>, %arg4: memref<128x128xf32, #tpu.memory_space<vmem>>, %arg5: memref<1x128xf32, #tpu.memory_space<vmem>>, %arg6: memref<128x128xf32, #tpu.memory_space<vmem>>, %arg7: memref<1x128xf32, #tpu.memory_space<vmem>>, %arg8: memref<1x128xf32, #tpu.memory_space<vmem>>, %arg9: memref<1x1xf32, #tpu.memory_space<vmem>>, %arg10: memref<1x1xf32, #tpu.memory_space<vmem>>) attributes {dimension_semantics = [#tpu.dimension_semantics<arbitrary>], iteration_bounds = array<i64: 1>, scalar_prefetch = 0 : i64, scratch_operands = 0 : i64, tpu.core_type = #tpu.core_type<tc>, window_params = [{pipeline_mode = #tpu.pipeline_mode<synchronous>, transform_indices = @transform_0, window_bounds = array<i64: 200, 128>}, {pipeline_mode = #tpu.pipeline_mode<synchronous>, transform_indices = @transform_1, window_bounds = array<i64: 200, 200>}, {pipeline_mode = #tpu.pipeline_mode<synchronous>, transform_indices = @transform_2, window_bounds = array<i64: 16, 200>}, {pipeline_mode = #tpu.pipeline_mode<synchronous>, transform_indices = @transform_3, window_bounds = array<i64: 128, 128>}, {pipeline_mode = #tpu.pipeline_mode<synchronous>, transform_indices = @transform_4, window_bounds = array<i64: 1, 128>}, {pipeline_mode = #tpu.pipeline_mode<synchronous>, transform_indices = @transform_5, window_bounds = array<i64: 128, 128>}, {pipeline_mode = #tpu.pipeline_mode<synchronous>, transform_indices = @transform_6, window_bounds = array<i64: 1, 128>}, {pipeline_mode = #tpu.pipeline_mode<synchronous>, transform_indices = @transform_7, window_bounds = array<i64: 1, 128>}, {pipeline_mode = #tpu.pipeline_mode<synchronous>, transform_indices = @transform_8, window_bounds = array<i64: 1, 1>}, {pipeline_mode = #tpu.pipeline_mode<synchronous>, transform_indices = @transform_9, window_bounds = array<i64: 1, 1>}]} {
    %c0 = arith.constant 0 : index
    %c0_0 = arith.constant 0 : index
    %0 = vector.load %arg1[%c0, %c0_0] : memref<200x128xf32, #tpu.memory_space<vmem>>, vector<200x128xf32>
    %c0_1 = arith.constant 0 : index
    %c0_2 = arith.constant 0 : index
    %1 = vector.load %arg4[%c0_1, %c0_2] : memref<128x128xf32, #tpu.memory_space<vmem>>, vector<128x128xf32>
    %cst = arith.constant dense<0.000000e+00> : vector<200x128xf32>
    %2 = tpu.matmul %0, %1, %cst {dimension_numbers = #tpu.dot_dimension_numbers<[1], [0], [0], [1], [0, 0, 1, 1], [], []>} : vector<200x128xf32>, vector<128x128xf32>, vector<200x128xf32> -> vector<200x128xf32>
    %c0_3 = arith.constant 0 : index
    %c0_4 = arith.constant 0 : index
    %3 = vector.load %arg5[%c0_3, %c0_4] : memref<1x128xf32, #tpu.memory_space<vmem>>, vector<1x128xf32>
    %4 = vector.broadcast %3 : vector<1x128xf32> to vector<200x128xf32>
    %5 = arith.addf %2, %4 : vector<200x128xf32>
    %c0_5 = arith.constant 0 : index
    %c0_6 = arith.constant 0 : index
    %6 = vector.load %arg2[%c0_5, %c0_6] : memref<200x200xf32, #tpu.memory_space<vmem>>, vector<200x200xf32>
    %cst_7 = arith.constant dense<0.000000e+00> : vector<200x128xf32>
    %7 = tpu.matmul %6, %5, %cst_7 {dimension_numbers = #tpu.dot_dimension_numbers<[1], [0], [0], [1], [0, 0, 1, 1], [], []>} : vector<200x200xf32>, vector<200x128xf32>, vector<200x128xf32> -> vector<200x128xf32>
    %cst_8 = arith.constant 0.000000e+00 : f32
    %8 = vector.broadcast %cst_8 : f32 to vector<200x128xf32>
    %9 = arith.maximumf %7, %8 : vector<200x128xf32>
    %c0_9 = arith.constant 0 : index
    %c0_10 = arith.constant 0 : index
    %10 = vector.load %arg6[%c0_9, %c0_10] : memref<128x128xf32, #tpu.memory_space<vmem>>, vector<128x128xf32>
    %cst_11 = arith.constant dense<0.000000e+00> : vector<200x128xf32>
    %11 = tpu.matmul %9, %10, %cst_11 {dimension_numbers = #tpu.dot_dimension_numbers<[1], [0], [0], [1], [0, 0, 1, 1], [], []>} : vector<200x128xf32>, vector<128x128xf32>, vector<200x128xf32> -> vector<200x128xf32>
    %c0_12 = arith.constant 0 : index
    %c0_13 = arith.constant 0 : index
    %12 = vector.load %arg7[%c0_12, %c0_13] : memref<1x128xf32, #tpu.memory_space<vmem>>, vector<1x128xf32>
    %13 = vector.broadcast %12 : vector<1x128xf32> to vector<200x128xf32>
    %14 = arith.addf %11, %13 : vector<200x128xf32>
    %c0_14 = arith.constant 0 : index
    %c0_15 = arith.constant 0 : index
    %15 = vector.load %arg3[%c0_14, %c0_15] : memref<16x200xf32, #tpu.memory_space<vmem>>, vector<16x200xf32>
    %cst_16 = arith.constant dense<0.000000e+00> : vector<16x128xf32>
    %16 = tpu.matmul %15, %14, %cst_16 {dimension_numbers = #tpu.dot_dimension_numbers<[1], [0], [0], [1], [0, 0, 1, 1], [], []>} : vector<16x200xf32>, vector<200x128xf32>, vector<16x128xf32> -> vector<16x128xf32>
    %cst_17 = arith.constant 0.000000e+00 : f32
    %17 = vector.broadcast %cst_17 : f32 to vector<16x128xf32>
    %18 = arith.maximumf %16, %17 : vector<16x128xf32>
    %cst_18 = arith.constant dense<0xFF800000> : vector<128xf32>
    %19 = vector.multi_reduction <maximumf>, %18, %cst_18 [0] : vector<16x128xf32> to vector<128xf32>
    %20 = vector.shape_cast %19 : vector<128xf32> to vector<1x128xf32>
    %c0_19 = arith.constant 0 : index
    %c0_20 = arith.constant 0 : index
    %21 = vector.load %arg8[%c0_19, %c0_20] : memref<1x128xf32, #tpu.memory_space<vmem>>, vector<1x128xf32>
    %22 = arith.mulf %20, %21 : vector<1x128xf32>
    %cst_21 = arith.constant dense<0.000000e+00> : vector<1xf32>
    %23 = vector.multi_reduction <add>, %22, %cst_21 [1] : vector<1x128xf32> to vector<1xf32>
    %24 = vector.shape_cast %23 : vector<1xf32> to vector<1x1xf32>
    %c0_22 = arith.constant 0 : index
    %c0_23 = arith.constant 0 : index
    %25 = vector.load %arg9[%c0_22, %c0_23] : memref<1x1xf32, #tpu.memory_space<vmem>>, vector<1x1xf32>
    %26 = arith.addf %24, %25 : vector<1x1xf32>
    %cst_24 = arith.constant 0.000000e+00 : f32
    %27 = vector.broadcast %cst_24 : f32 to vector<1x1xf32>
    %28 = arith.subf %27, %26 : vector<1x1xf32>
    %29 = math.exp %28 : vector<1x1xf32>
    %cst_25 = arith.constant 1.000000e+00 : f32
    %30 = vector.broadcast %cst_25 : f32 to vector<1x1xf32>
    %31 = arith.addf %30, %29 : vector<1x1xf32>
    %cst_26 = arith.constant 1.000000e+00 : f32
    %32 = vector.broadcast %cst_26 : f32 to vector<1x1xf32>
    %33 = arith.divf %32, %31 : vector<1x1xf32>
    %c0_27 = arith.constant 0 : index
    %c0_28 = arith.constant 0 : index
    %34 = vector.load %arg10[%c0_27, %c0_28] : memref<1x1xf32, #tpu.memory_space<vmem>>, vector<1x1xf32>
    tpu.vector_store %arg10[%c0_27, %c0_28], %33 {strides = array<i32>} : memref<1x1xf32, #tpu.memory_space<vmem>>, vector<1x1xf32>,
    return
  }
  func.func @transform_0(%arg0: i32) -> (i32, i32) {
    %c0_i32 = arith.constant 0 : i32
    %c0_i32_0 = arith.constant 0 : i32
    %c0_i32_1 = arith.constant 0 : i32
    return %c0_i32, %c0_i32_0 : i32, i32
  }
  func.func @transform_1(%arg0: i32) -> (i32, i32) {
    %c0_i32 = arith.constant 0 : i32
    %c0_i32_0 = arith.constant 0 : i32
    %c0_i32_1 = arith.constant 0 : i32
    return %c0_i32, %c0_i32_0 : i32, i32
  }
  func.func @transform_2(%arg0: i32) -> (i32, i32) {
    %c0_i32 = arith.constant 0 : i32
    %c0_i32_0 = arith.constant 0 : i32
    %c0_i32_1 = arith.constant 0 : i32
    return %c0_i32, %c0_i32_0 : i32, i32
  }
  func.func @transform_3(%arg0: i32) -> (i32, i32) {
    %c0_i32 = arith.constant 0 : i32
    %c0_i32_0 = arith.constant 0 : i32
    %c0_i32_1 = arith.constant 0 : i32
    return %c0_i32, %c0_i32_0 : i32, i32
  }
  func.func @transform_4(%arg0: i32) -> (i32, i32) {
    %c0_i32 = arith.constant 0 : i32
    %c0_i32_0 = arith.constant 0 : i32
    %c0_i32_1 = arith.constant 0 : i32
    return %c0_i32, %c0_i32_0 : i32, i32
  }
  func.func @transform_5(%arg0: i32) -> (i32, i32) {
    %c0_i32 = arith.constant 0 : i32
    %c0_i32_0 = arith.constant 0 : i32
    %c0_i32_1 = arith.constant 0 : i32
    return %c0_i32, %c0_i32_0 : i32, i32
  }
  func.func @transform_6(%arg0: i32) -> (i32, i32) {
    %c0_i32 = arith.constant 0 : i32
    %c0_i32_0 = arith.constant 0 : i32
    %c0_i32_1 = arith.constant 0 : i32
    return %c0_i32, %c0_i32_0 : i32, i32
  }
  func.func @transform_7(%arg0: i32) -> (i32, i32) {
    %c0_i32 = arith.constant 0 : i32
    %c0_i32_0 = arith.constant 0 : i32
    %c0_i32_1 = arith.constant 0 : i32
    return %c0_i32, %c0_i32_0 : i32, i32
  }
  func.func @transform_8(%arg0: i32) -> (i32, i32) {
    %c0_i32 = arith.constant 0 : i32
    %c0_i32_0 = arith.constant 0 : i32
    %c0_i32_1 = arith.constant 0 : i32
    return %c0_i32, %c0_i32_0 : i32, i32
  }
  func.func @transform_9(%arg0: i32) -> (i32, i32) {
    %c0_i32 = arith.constant 0 : i32
    %c0_i32_0 = arith.constant 0 : i32
    %c0_i32_1 = arith.constant 0 : i32
    return %c0_i32, %c0_i32_0 : i32, i32
  }
}

</mosaic_0001>

<llo_original>
// kernel: tpu_custom_call.1
$region0: #{tpu_custom_call.1}
  #allocation0 [shape = 'u32[]', space=smem, size = 0x4, offset = 0x4, fixed_abs, tag = 'smem constant byte address 0x4 - core index']
  #allocation1 [shape = 'u32[144,128]{1,0:T(1,128)}', space=vmem, size = 0x12000, scoped, tag = 'internal scratch']
  #allocation2 [shape = 'f32[1,1]{1,0:T(1,128)S(1)}', space=vmem, size = 0x200, scoped, tag = 'scoped memory for tpu_custom_call.1']
  %s0 = inlined_call_operand.hbm [shape: f32[200,128], index: 0, kind: input, shape index: {}]
  %s1 = inlined_call_operand.hbm [shape: f32[200,200], index: 1, kind: input, shape index: {}]
  %s2 = inlined_call_operand.hbm [shape: f32[16,200], index: 2, kind: input, shape index: {}]
  %s3 = inlined_call_operand.hbm [shape: f32[128,128], index: 3, kind: input, shape index: {}]
  %s4 = inlined_call_operand.vmem [shape: f32[1,128], index: 4, kind: input, shape index: {}]
  %s5 = inlined_call_operand.hbm [shape: f32[128,128], index: 5, kind: input, shape index: {}]
  %s6 = inlined_call_operand.vmem [shape: f32[1,128], index: 6, kind: input, shape index: {}]
  %s7 = inlined_call_operand.vmem [shape: f32[1,128], index: 7, kind: input, shape index: {}]
  %s8 = inlined_call_operand.<no memory space> [shape: f32[1,1], index: 8, kind: input, shape index: {}]
  %s9 = inlined_call_operand.hbm [shape: f32[1,1], index: 9, kind: output, shape index: {}]
  %s10 = sld [smem:[#allocation0]]
  $region66: #{tpu_custom_call.1} parent=0
    _
  %s12 = ssub.s32 1, %s10
  %s13 = scalar_select 0, %s12, %s10
  %v14 = vstv %s8
  %15 = vst [vmem:[#allocation2] sm:$0x1] %v14
  $region1: #{tpu_custom_call.1} parent=0
    #allocation3 [shape = 'u8[102400]{0}', space=vmem, size = 0x19000, scoped, tag = 'input window, operand 0, single buffered']
    #allocation4 [shape = 's32[1]{0}', space=sflag, size = 0x4, scoped, tag = 'scoped memory for tpu_custom_call.1']
    #allocation5 [shape = 's32[1]{0}', space=sflag, size = 0x4, scoped, tag = 'scoped memory for tpu_custom_call.1']
    #allocation6 [shape = 'u8[204800]{0}', space=vmem, size = 0x32000, scoped, tag = 'input window, operand 1, single buffered']
    #allocation7 [shape = 's32[1]{0}', space=sflag, size = 0x4, scoped, tag = 'scoped memory for tpu_custom_call.1']
    #allocation8 [shape = 'u8[16384]{0}', space=vmem, size = 0x4000, scoped, tag = 'input window, operand 2, single buffered']
    #allocation9 [shape = 'u8[65536]{0}', space=vmem, size = 0x10000, scoped, tag = 'input window, operand 3, single buffered']
    #allocation10 [shape = 's32[1]{0}', space=sflag, size = 0x4, scoped, tag = 'scoped memory for tpu_custom_call.1']
    #allocation11 [shape = 'u8[65536]{0}', space=vmem, size = 0x10000, scoped, tag = 'input window, operand 5, single buffered']
    #allocation12 [shape = 'u8[512]{0}', space=vmem, size = 0x400, scoped, tag = 'output window, operand 0, single buffered']
    %16 = vsyncpa [#allocation4], 0
    %17 = vsyncpa [#allocation7], 0
    %18 = vsyncpa [#allocation10], 0
    %19 = vsyncpa [#allocation5], 0
    // Predicated region
    $region2: #{tpu_custom_call.1} parent=1 // pred_check
      _
    $region3: #{tpu_custom_call.1} parent=1 // pred_check_branch
      %21 = sbr.rel (0) target = $region5
    $region4: #{tpu_custom_call.1} parent=1 // pred_region
      %s23 = ssub.s32 3200, 3200
      %24 = vsyncadd [#allocation4], %s23
      %s25 = sshll.u32 [#allocation3], 4
      %s26 = int_to_ptr.vmem [resolvable:$true] %s25
      %31 = dma.hbm_to_vmem [thread:$0]  %s0, 3200, %s26, [#allocation4], 128, 128, 8
    $region5: #{tpu_custom_call.1} parent=1 // pred_fallthru
      _
    // Predicated region
    $region6: #{tpu_custom_call.1} parent=1 // pred_check
      _
    $region7: #{tpu_custom_call.1} parent=1 // pred_check_branch
      %33 = sbr.rel (0) target = $region9
    $region8: #{tpu_custom_call.1} parent=1 // pred_region
      %s35 = ssub.s32 6400, 6400
      %36 = vsyncadd [#allocation7], %s35
      %s37 = sshll.u32 [#allocation6], 4
      %s38 = int_to_ptr.vmem [resolvable:$true] %s37
      %43 = dma.hbm_to_vmem [thread:$0]  %s1, 6400, %s38, [#allocation7], 256, 256, 16
    $region9: #{tpu_custom_call.1} parent=1 // pred_fallthru
      _
    // Predicated region
    $region10: #{tpu_custom_call.1} parent=1 // pred_check
      _
    $region11: #{tpu_custom_call.1} parent=1 // pred_check_branch
      %45 = sbr.rel (0) target = $region13
    $region12: #{tpu_custom_call.1} parent=1 // pred_region
      %s47 = ssub.s32 512, 512
      %48 = vsyncadd [#allocation7], %s47
      %s49 = sshll.u32 [#allocation8], 4
      %s50 = int_to_ptr.vmem [resolvable:$true] %s49
      %55 = dma.hbm_to_vmem [thread:$0]  %s2, 512, %s50, [#allocation7], 256, 256, 16
    $region13: #{tpu_custom_call.1} parent=1 // pred_fallthru
      _
    // Predicated region
    $region14: #{tpu_custom_call.1} parent=1 // pred_check
      _
    $region15: #{tpu_custom_call.1} parent=1 // pred_check_branch
      %57 = sbr.rel (0) target = $region17
    $region16: #{tpu_custom_call.1} parent=1 // pred_region
      %s59 = ssub.s32 2048, 2048
      %60 = vsyncadd [#allocation10], %s59
      %s61 = sshll.u32 [#allocation9], 4
      %s62 = int_to_ptr.vmem [resolvable:$true] %s61
      %67 = dma.hbm_to_vmem [thread:$0]  %s3, 2048, %s62, [#allocation10], 128, 128, 8
    $region17: #{tpu_custom_call.1} parent=1 // pred_fallthru
      _
    // Predicated region
    $region18: #{tpu_custom_call.1} parent=1 // pred_check
      _
    $region19: #{tpu_custom_call.1} parent=1 // pred_check_branch
      %69 = sbr.rel (0) target = $region21
    $region20: #{tpu_custom_call.1} parent=1 // pred_region
      _
    $region21: #{tpu_custom_call.1} parent=1 // pred_fallthru
      _
    // Predicated region
    $region22: #{tpu_custom_call.1} parent=1 // pred_check
      _
    $region23: #{tpu_custom_call.1} parent=1 // pred_check_branch
      %71 = sbr.rel (0) target = $region25
    $region24: #{tpu_custom_call.1} parent=1 // pred_region
      %s73 = ssub.s32 2048, 2048
      %74 = vsyncadd [#allocation10], %s73
      %s75 = sshll.u32 [#allocation11], 4
      %s76 = int_to_ptr.vmem [resolvable:$true] %s75
      %81 = dma.hbm_to_vmem [thread:$0]  %s5, 2048, %s76, [#allocation10], 128, 128, 8
    $region25: #{tpu_custom_call.1} parent=1 // pred_fallthru
      _
    // Predicated region
    $region26: #{tpu_custom_call.1} parent=1 // pred_check
      _
    $region27: #{tpu_custom_call.1} parent=1 // pred_check_branch
      %83 = sbr.rel (0) target = $region29
    $region28: #{tpu_custom_call.1} parent=1 // pred_region
      _
    $region29: #{tpu_custom_call.1} parent=1 // pred_fallthru
      _
    // Predicated region
    $region30: #{tpu_custom_call.1} parent=1 // pred_check
      _
    $region31: #{tpu_custom_call.1} parent=1 // pred_check_branch
      %85 = sbr.rel (0) target = $region33
    $region32: #{tpu_custom_call.1} parent=1 // pred_region
      _
    $region33: #{tpu_custom_call.1} parent=1 // pred_fallthru
      _
    // Predicated region
    $region34: #{tpu_custom_call.1} parent=1 // pred_check
      _
    $region35: #{tpu_custom_call.1} parent=1 // pred_check_branch
      %87 = sbr.rel (0) target = $region37
    $region36: #{tpu_custom_call.1} parent=1 // pred_region
      _
    $region37: #{tpu_custom_call.1} parent=1 // pred_fallthru
      _
    // Predicated region
    $region38: #{tpu_custom_call.1} parent=1 // pred_check
      _
    $region39: #{tpu_custom_call.1} parent=1 // pred_check_branch
      %89 = sbr.rel (0) target = $region41
    $region40: #{tpu_custom_call.1} parent=1 // pred_region
      %90 = dma.done [#allocation4], 3200
    $region41: #{tpu_custom_call.1} parent=1 // pred_fallthru
      _
    // Predicated region
    $region42: #{tpu_custom_call.1} parent=1 // pred_check
      _
    $region43: #{tpu_custom_call.1} parent=1 // pred_check_branch
      %92 = sbr.rel (0) target = $region45
    $region44: #{tpu_custom_call.1} parent=1 // pred_region
      %93 = dma.done [#allocation7], 6400
    $region45: #{tpu_custom_call.1} parent=1 // pred_fallthru
      _
    // Predicated region
    $region46: #{tpu_custom_call.1} parent=1 // pred_check
      _
    $region47: #{tpu_custom_call.1} parent=1 // pred_check_branch
      %95 = sbr.rel (0) target = $region49
    $region48: #{tpu_custom_call.1} parent=1 // pred_region
      %96 = dma.done [#allocation7], 512
    $region49: #{tpu_custom_call.1} parent=1 // pred_fallthru
      _
    // Predicated region
    $region50: #{tpu_custom_call.1} parent=1 // pred_check
      _
    $region51: #{tpu_custom_call.1} parent=1 // pred_check_branch
      %98 = sbr.rel (0) target = $region53
    $region52: #{tpu_custom_call.1} parent=1 // pred_region
      %99 = dma.done [#allocation10], 2048
    $region53: #{tpu_custom_call.1} parent=1 // pred_fallthru
      _
    // Predicated region
    $region54: #{tpu_custom_call.1} parent=1 // pred_check
      _
    $region55: #{tpu_custom_call.1} parent=1 // pred_check_branch
      %101 = sbr.rel (0) target = $region57
    $region56: #{tpu_custom_call.1} parent=1 // pred_region
      %102 = dma.done [#allocation10], 2048
    $region57: #{tpu_custom_call.1} parent=1 // pred_fallthru
      _
    %v103 = vld [vmem:[#allocation3] sm:$0xff]
    %v104 = vld [vmem:[#allocation3 + $0x8] sm:$0xff]
    %v105 = vld [vmem:[#allocation3 + $0x10] sm:$0xff]
    %v106 = vld [vmem:[#allocation3 + $0x18] sm:$0xff]
    %v107 = vld [vmem:[#allocation3 + $0x20] sm:$0xff]
    %v108 = vld [vmem:[#allocation3 + $0x28] sm:$0xff]
    %v109 = vld [vmem:[#allocation3 + $0x30] sm:$0xff]
    %v110 = vld [vmem:[#allocation3 + $0x38] sm:$0xff]
    %v111 = vld [vmem:[#allocation3 + $0x40] sm:$0xff]
    %v112 = vld [vmem:[#allocation3 + $0x48] sm:$0xff]
    %v113 = vld [vmem:[#allocation3 + $0x50] sm:$0xff]
    %v114 = vld [vmem:[#allocation3 + $0x58] sm:$0xff]
    %v115 = vld [vmem:[#allocation3 + $0x60] sm:$0xff]
    %v116 = vld [vmem:[#allocation3 + $0x68] sm:$0xff]
    %v117 = vld [vmem:[#allocation3 + $0x70] sm:$0xff]
    %v118 = vld [vmem:[#allocation3 + $0x78] sm:$0xff]
    %v119 = vld [vmem:[#allocation3 + $0x80] sm:$0xff]
    %v120 = vld [vmem:[#allocation3 + $0x88] sm:$0xff]
    %v121 = vld [vmem:[#allocation3 + $0x90] sm:$0xff]
    %v122 = vld [vmem:[#allocation3 + $0x98] sm:$0xff]
    %v123 = vld [vmem:[#allocation3 + $0xa0] sm:$0xff]
    %v124 = vld [vmem:[#allocation3 + $0xa8] sm:$0xff]
    %v125 = vld [vmem:[#allocation3 + $0xb0] sm:$0xff]
    %v126 = vld [vmem:[#allocation3 + $0xb8] sm:$0xff]
    %v127 = vld [vmem:[#allocation3 + $0xc0] sm:$0xff]
    %v128 = vld [vmem:[#allocation9] sm:$0xff]
    %v129 = vld [vmem:[#allocation9 + $0x8] sm:$0xff]
    %v130 = vld [vmem:[#allocation9 + $0x10] sm:$0xff]
    %v131 = vld [vmem:[#allocation9 + $0x18] sm:$0xff]
    %v132 = vld [vmem:[#allocation9 + $0x20] sm:$0xff]
    %v133 = vld [vmem:[#allocation9 + $0x28] sm:$0xff]
    %v134 = vld [vmem:[#allocation9 + $0x30] sm:$0xff]
    %v135 = vld [vmem:[#allocation9 + $0x38] sm:$0xff]
    %v136 = vld [vmem:[#allocation9 + $0x40] sm:$0xff]
    %v137 = vld [vmem:[#allocation9 + $0x48] sm:$0xff]
    %v138 = vld [vmem:[#allocation9 + $0x50] sm:$0xff]
    %v139 = vld [vmem:[#allocation9 + $0x58] sm:$0xff]
    %v140 = vld [vmem:[#allocation9 + $0x60] sm:$0xff]
    %v141 = vld [vmem:[#allocation9 + $0x68] sm:$0xff]
    %v142 = vld [vmem:[#allocation9 + $0x70] sm:$0xff]
    %v143 = vld [vmem:[#allocation9 + $0x78] sm:$0xff]
    %v144 = vld [vmem:[%s4] sm:$0x1]
    %v146 = vlaneseq
    %v147 = vshrl.u32 %v146, 7
    %v148 = vsub.s32 0, %v147
    %v149 = vrot.slane %v144, %v148
    %151 = vmatprep.subr.mxu0 0.0
    %152 = vmatpush1.msra.mxu0 %v143
    %153 = vmatprep.subr.mxu0 0.0
    %154 = vmatpush1.msra.mxu0 %v142
    %155 = vmatprep.subr.mxu0 0.0
    %156 = vmatpush1.msra.mxu0 %v141
    %157 = vmatprep.subr.mxu0 0.0
    %158 = vmatpush1.msra.mxu0 %v140
    %159 = vmatprep.subr.mxu0 0.0
    %160 = vmatpush1.msra.mxu0 %v139
    %161 = vmatprep.subr.mxu0 0.0
    %162 = vmatpush1.msra.mxu0 %v138
    %163 = vmatprep.subr.mxu0 0.0
    %164 = vmatpush1.msra.mxu0 %v137
    %165 = vmatprep.subr.mxu0 0.0
    %166 = vmatpush1.msra.mxu0 %v136
    %167 = vmatprep.subr.mxu0 0.0
    %168 = vmatpush1.msra.mxu0 %v135
    %169 = vmatprep.subr.mxu0 0.0
    %170 = vmatpush1.msra.mxu0 %v134
    %171 = vmatprep.subr.mxu0 0.0
    %172 = vmatpush1.msra.mxu0 %v133
    %173 = vmatprep.subr.mxu0 0.0
    %174 = vmatpush1.msra.mxu0 %v132
    %175 = vmatprep.subr.mxu0 0.0
    %176 = vmatpush1.msra.mxu0 %v131
    %177 = vmatprep.subr.mxu0 0.0
    %178 = vmatpush1.msra.mxu0 %v130
    %179 = vmatprep.subr.mxu0 0.0
    %180 = vmatpush1.msra.mxu0 %v129
    %181 = vmatprep.subr.mxu0 0.0
    %182 = vmatpush1.msra.mxu0 %v128
    %183 = vmatprep.subr.mxu0 0.0
    %184 = vmatpush2.msra.mxu0 0.0
    %185 = vmatprep.subr.mxu0 0.0
    %186 = vmatpush2.msra.mxu0 0.0
    %187 = vmatprep.subr.mxu0 0.0
    %188 = vmatpush2.msra.mxu0 0.0
    %189 = vmatprep.subr.mxu0 0.0
    %190 = vmatpush2.msra.mxu0 0.0
    %191 = vmatprep.subr.mxu0 0.0
    %192 = vmatpush2.msra.mxu0 0.0
    %193 = vmatprep.subr.mxu0 0.0
    %194 = vmatpush2.msra.mxu0 0.0
    %195 = vmatprep.subr.mxu0 0.0
    %196 = vmatpush2.msra.mxu0 0.0
    %197 = vmatprep.subr.mxu0 0.0
    %198 = vmatpush2.msra.mxu0 0.0
    %199 = vmatprep.subr.mxu0 0.0
    %200 = vmatpush2.msra.mxu0 0.0
    %201 = vmatprep.subr.mxu0 0.0
    %202 = vmatpush2.msra.mxu0 0.0
    %203 = vmatprep.subr.mxu0 0.0
    %204 = vmatpush2.msra.mxu0 0.0
    %205 = vmatprep.subr.mxu0 0.0
    %206 = vmatpush2.msra.mxu0 0.0
    %207 = vmatprep.subr.mxu0 0.0
    %208 = vmatpush2.msra.mxu0 0.0
    %209 = vmatprep.subr.mxu0 0.0
    %210 = vmatpush2.msra.mxu0 0.0
    %211 = vmatprep.subr.mxu0 0.0
    %212 = vmatpush2.msra.mxu0 0.0
    %213 = vmatprep.subr.mxu0 0.0
    %214 = vmatpush2.msra.mxu0 0.0
    %215 = vmatprep.mubr.f32.mxu0 0.0
    %216 = vmatmul.mubr.f32.gmra.mxu0 %v103
    %v217 = vpop.f32.mrf.mxu0
    %v218 = vadd.f32 %v149, %v217
    %v219 = vpop.f32.mrf.mxu0
    %220 = vmatprep.mubr.f32.mxu0 0.0
    %221 = vmatmul.mubr.f32.gmra.mxu0 %v104
    %v222 = vpop.f32.mrf.mxu0
    %v223 = vadd.f32 %v149, %v222
    %v224 = vpop.f32.mrf.mxu0
    %225 = vmatprep.mubr.f32.mxu0 0.0
    %226 = vmatmul.mubr.f32.gmra.mxu0 %v105
    %v227 = vpop.f32.mrf.mxu0
    %v228 = vadd.f32 %v149, %v227
    %v229 = vpop.f32.mrf.mxu0
    %230 = vmatprep.mubr.f32.mxu0 0.0
    %231 = vmatmul.mubr.f32.gmra.mxu0 %v106
    %v232 = vpop.f32.mrf.mxu0
    %v233 = vadd.f32 %v149, %v232
    %v234 = vpop.f32.mrf.mxu0
    %235 = vmatprep.mubr.f32.mxu0 0.0
    %236 = vmatmul.mubr.f32.gmra.mxu0 %v107
    %v237 = vpop.f32.mrf.mxu0
    %v238 = vadd.f32 %v149, %v237
    %v239 = vpop.f32.mrf.mxu0
    %240 = vmatprep.mubr.f32.mxu0 0.0
    %241 = vmatmul.mubr.f32.gmra.mxu0 %v108
    %v242 = vpop.f32.mrf.mxu0
    %v243 = vadd.f32 %v149, %v242
    %v244 = vpop.f32.mrf.mxu0
    %245 = vmatprep.mubr.f32.mxu0 0.0
    %246 = vmatmul.mubr.f32.gmra.mxu0 %v109
    %v247 = vpop.f32.mrf.mxu0
    %v248 = vadd.f32 %v149, %v247
    %v249 = vpop.f32.mrf.mxu0
    %250 = vmatprep.mubr.f32.mxu0 0.0
    %251 = vmatmul.mubr.f32.gmra.mxu0 %v110
    %v252 = vpop.f32.mrf.mxu0
    %v253 = vadd.f32 %v149, %v252
    %v254 = vpop.f32.mrf.mxu0
    %255 = vmatprep.mubr.f32.mxu0 0.0
    %256 = vmatmul.mubr.f32.gmra.mxu0 %v111
    %v257 = vpop.f32.mrf.mxu0
    %v258 = vadd.f32 %v149, %v257
    %v259 = vpop.f32.mrf.mxu0
    %260 = vmatprep.mubr.f32.mxu0 0.0
    %261 = vmatmul.mubr.f32.gmra.mxu0 %v112
    %v262 = vpop.f32.mrf.mxu0
    %v263 = vadd.f32 %v149, %v262
    %v264 = vpop.f32.mrf.mxu0
    %265 = vmatprep.mubr.f32.mxu0 0.0
    %266 = vmatmul.mubr.f32.gmra.mxu0 %v113
    %v267 = vpop.f32.mrf.mxu0
    %v268 = vadd.f32 %v149, %v267
    %v269 = vpop.f32.mrf.mxu0
    %270 = vmatprep.mubr.f32.mxu0 0.0
    %271 = vmatmul.mubr.f32.gmra.mxu0 %v114
    %v272 = vpop.f32.mrf.mxu0
    %v273 = vadd.f32 %v149, %v272
    %v274 = vpop.f32.mrf.mxu0
    %275 = vmatprep.mubr.f32.mxu0 0.0
    %276 = vmatmul.mubr.f32.gmra.mxu0 %v115
    %v277 = vpop.f32.mrf.mxu0
    %v278 = vadd.f32 %v149, %v277
    %v279 = vpop.f32.mrf.mxu0
    %280 = vmatprep.mubr.f32.mxu0 0.0
    %281 = vmatmul.mubr.f32.gmra.mxu0 %v116
    %v282 = vpop.f32.mrf.mxu0
    %v283 = vadd.f32 %v149, %v282
    %v284 = vpop.f32.mrf.mxu0
    %285 = vmatprep.mubr.f32.mxu0 0.0
    %286 = vmatmul.mubr.f32.gmra.mxu0 %v117
    %v287 = vpop.f32.mrf.mxu0
    %v288 = vadd.f32 %v149, %v287
    %v289 = vpop.f32.mrf.mxu0
    %290 = vmatprep.mubr.f32.mxu0 0.0
    %291 = vmatmul.mubr.f32.gmra.mxu0 %v118
    %v292 = vpop.f32.mrf.mxu0
    %v293 = vadd.f32 %v149, %v292
    %v294 = vpop.f32.mrf.mxu0
    %295 = vmatprep.mubr.f32.mxu0 0.0
    %296 = vmatmul.mubr.f32.gmra.mxu0 %v119
    %v297 = vpop.f32.mrf.mxu0
    %v298 = vadd.f32 %v149, %v297
    %v299 = vpop.f32.mrf.mxu0
    %300 = vmatprep.mubr.f32.mxu0 0.0
    %301 = vmatmul.mubr.f32.gmra.mxu0 %v120
    %v302 = vpop.f32.mrf.mxu0
    %v303 = vadd.f32 %v149, %v302
    %v304 = vpop.f32.mrf.mxu0
    %305 = vmatprep.mubr.f32.mxu0 0.0
    %306 = vmatmul.mubr.f32.gmra.mxu0 %v121
    %v307 = vpop.f32.mrf.mxu0
    %v308 = vadd.f32 %v149, %v307
    %v309 = vpop.f32.mrf.mxu0
    %310 = vmatprep.mubr.f32.mxu0 0.0
    %311 = vmatmul.mubr.f32.gmra.mxu0 %v122
    %v312 = vpop.f32.mrf.mxu0
    %v313 = vadd.f32 %v149, %v312
    %v314 = vpop.f32.mrf.mxu0
    %315 = vmatprep.mubr.f32.mxu0 0.0
    %316 = vmatmul.mubr.f32.gmra.mxu0 %v123
    %v317 = vpop.f32.mrf.mxu0
    %v318 = vadd.f32 %v149, %v317
    %v319 = vpop.f32.mrf.mxu0
    %320 = vmatprep.mubr.f32.mxu0 0.0
    %321 = vmatmul.mubr.f32.gmra.mxu0 %v124
    %v322 = vpop.f32.mrf.mxu0
    %v323 = vadd.f32 %v149, %v322
    %v324 = vpop.f32.mrf.mxu0
    %325 = vmatprep.mubr.f32.mxu0 0.0
    %326 = vmatmul.mubr.f32.gmra.mxu0 %v125
    %v327 = vpop.f32.mrf.mxu0
    %v328 = vadd.f32 %v149, %v327
    %v329 = vpop.f32.mrf.mxu0
    %330 = vmatprep.mubr.f32.mxu0 0.0
    %331 = vmatmul.mubr.f32.gmra.mxu0 %v126
    %v332 = vpop.f32.mrf.mxu0
    %v333 = vadd.f32 %v149, %v332
    %v334 = vpop.f32.mrf.mxu0
    %335 = vmatprep.mubr.f32.mxu0 0.0
    %336 = vmatmul.mubr.f32.gmra.mxu0 %v127
    %v337 = vpop.f32.mrf.mxu0
    %v338 = vadd.f32 %v149, %v337
    %v339 = vpop.f32.mrf.mxu0
    %340 = vdwg.mxu0
    %v341 = vld [vmem:[#allocation6] sm:$0xff]
    %v342 = vld [vmem:[#allocation6 + $0x8] sm:$0xff]
    %v343 = vld [vmem:[#allocation6 + $0x10] sm:$0xff]
    %v344 = vld [vmem:[#allocation6 + $0x18] sm:$0xff]
    %v345 = vld [vmem:[#allocation6 + $0x20] sm:$0xff]
    %v346 = vld [vmem:[#allocation6 + $0x28] sm:$0xff]
    %v347 = vld [vmem:[#allocation6 + $0x30] sm:$0xff]
    %v348 = vld [vmem:[#allocation6 + $0x38] sm:$0xff]
    %v349 = vld [vmem:[#allocation6 + $0x40] sm:$0xff]
    %v350 = vld [vmem:[#allocation6 + $0x48] sm:$0xff]
    %v351 = vld [vmem:[#allocation6 + $0x50] sm:$0xff]
    %v352 = vld [vmem:[#allocation6 + $0x58] sm:$0xff]
    %v353 = vld [vmem:[#allocation6 + $0x60] sm:$0xff]
    %v354 = vld [vmem:[#allocation6 + $0x68] sm:$0xff]
    %v355 = vld [vmem:[#allocation6 + $0x70] sm:$0xff]
    %v356 = vld [vmem:[#allocation6 + $0x78] sm:$0xff]
    %v357 = vld [vmem:[#allocation6 + $0x80] sm:$0xff]
    %v358 = vld [vmem:[#allocation6 + $0x88] sm:$0xff]
    %v359 = vld [vmem:[#allocation6 + $0x90] sm:$0xff]
    %v360 = vld [vmem:[#allocation6 + $0x98] sm:$0xff]
    %v361 = vld [vmem:[#allocation6 + $0xa0] sm:$0xff]
    %v362 = vld [vmem:[#allocation6 + $0xa8] sm:$0xff]
    %v363 = vld [vmem:[#allocation6 + $0xb0] sm:$0xff]
    %v364 = vld [vmem:[#allocation6 + $0xb8] sm:$0xff]
    %v365 = vld [vmem:[#allocation6 + $0xc0] sm:$0xff]
    %v366 = vld [vmem:[#allocation6 + $0xc8] sm:$0xff]
    %v367 = vld [vmem:[#allocation6 + $0xd0] sm:$0xff]
    %v368 = vld [vmem:[#allocation6 + $0xd8] sm:$0xff]
    %v369 = vld [vmem:[#allocation6 + $0xe0] sm:$0xff]
    %v370 = vld [vmem:[#allocation6 + $0xe8] sm:$0xff]
    %v371 = vld [vmem:[#allocation6 + $0xf0] sm:$0xff]
    %v372 = vld [vmem:[#allocation6 + $0xf8] sm:$0xff]
    %v373 = vld [vmem:[#allocation6 + $0x100] sm:$0xff]
    %v374 = vld [vmem:[#allocation6 + $0x108] sm:$0xff]
    %v375 = vld [vmem:[#allocation6 + $0x110] sm:$0xff]
    %v376 = vld [vmem:[#allocation6 + $0x118] sm:$0xff]
    %v377 = vld [vmem:[#allocation6 + $0x120] sm:$0xff]
    %v378 = vld [vmem:[#allocation6 + $0x128] sm:$0xff]
    %v379 = vld [vmem:[#allocation6 + $0x130] sm:$0xff]
    %v380 = vld [vmem:[#allocation6 + $0x138] sm:$0xff]
    %v381 = vld [vmem:[#allocation6 + $0x140] sm:$0xff]
    %v382 = vld [vmem:[#allocation6 + $0x148] sm:$0xff]
    %v383 = vld [vmem:[#allocation6 + $0x150] sm:$0xff]
    %v384 = vld [vmem:[#allocation6 + $0x158] sm:$0xff]
    %v385 = vld [vmem:[#allocation6 + $0x160] sm:$0xff]
    %v386 = vld [vmem:[#allocation6 + $0x168] sm:$0xff]
    %v387 = vld [vmem:[#allocation6 + $0x170] sm:$0xff]
    %v388 = vld [vmem:[#allocation6 + $0x178] sm:$0xff]
    %v389 = vld [vmem:[#allocation6 + $0x180] sm:$0xff]
    %v390 = vld [vmem:[#allocation6 + $0x188] sm:$0xff]
    %vm391 = vcmask 588800
    %v393 = vsel %vm391, %v342, 0
    %v396 = vsel %vm391, %v344, 0
    %v399 = vsel %vm391, %v346, 0
    %v402 = vsel %vm391, %v348, 0
    %v405 = vsel %vm391, %v350, 0
    %v408 = vsel %vm391, %v352, 0
    %v411 = vsel %vm391, %v354, 0
    %v414 = vsel %vm391, %v356, 0
    %v417 = vsel %vm391, %v358, 0
    %v420 = vsel %vm391, %v360, 0
    %v423 = vsel %vm391, %v362, 0
    %v426 = vsel %vm391, %v364, 0
    %v429 = vsel %vm391, %v366, 0
    %v432 = vsel %vm391, %v368, 0
    %v435 = vsel %vm391, %v370, 0
    %v438 = vsel %vm391, %v372, 0
    %v441 = vsel %vm391, %v374, 0
    %v444 = vsel %vm391, %v376, 0
    %v447 = vsel %vm391, %v378, 0
    %v450 = vsel %vm391, %v380, 0
    %v453 = vsel %vm391, %v382, 0
    %v456 = vsel %vm391, %v384, 0
    %v459 = vsel %vm391, %v386, 0
    %v462 = vsel %vm391, %v388, 0
    %v465 = vsel %vm391, %v390, 0
    %467 = vmatprep.subr.mxu0 0.0
    %468 = vmatpush1.msra.mxu0 %v293
    %469 = vmatprep.subr.mxu0 0.0
    %470 = vmatpush1.msra.mxu0 %v288
    %471 = vmatprep.subr.mxu0 0.0
    %472 = vmatpush1.msra.mxu0 %v283
    %473 = vmatprep.subr.mxu0 0.0
    %474 = vmatpush1.msra.mxu0 %v278
    %475 = vmatprep.subr.mxu0 0.0
    %476 = vmatpush1.msra.mxu0 %v273
    %477 = vmatprep.subr.mxu0 0.0
    %478 = vmatpush1.msra.mxu0 %v268
    %479 = vmatprep.subr.mxu0 0.0
    %480 = vmatpush1.msra.mxu0 %v263
    %481 = vmatprep.subr.mxu0 0.0
    %482 = vmatpush1.msra.mxu0 %v258
    %483 = vmatprep.subr.mxu0 0.0
    %484 = vmatpush1.msra.mxu0 %v253
    %485 = vmatprep.subr.mxu0 0.0
    %486 = vmatpush1.msra.mxu0 %v248
    %487 = vmatprep.subr.mxu0 0.0
    %488 = vmatpush1.msra.mxu0 %v243
    %489 = vmatprep.subr.mxu0 0.0
    %490 = vmatpush1.msra.mxu0 %v238
    %491 = vmatprep.subr.mxu0 0.0
    %492 = vmatpush1.msra.mxu0 %v233
    %493 = vmatprep.subr.mxu0 0.0
    %494 = vmatpush1.msra.mxu0 %v228
    %495 = vmatprep.subr.mxu0 0.0
    %496 = vmatpush1.msra.mxu0 %v223
    %497 = vmatprep.subr.mxu0 0.0
    %498 = vmatpush1.msra.mxu0 %v218
    %499 = vmatprep.subr.mxu0 0.0
    %500 = vmatpush2.msra.mxu0 0.0
    %501 = vmatprep.subr.mxu0 0.0
    %502 = vmatpush2.msra.mxu0 0.0
    %503 = vmatprep.subr.mxu0 0.0
    %504 = vmatpush2.msra.mxu0 0.0
    %505 = vmatprep.subr.mxu0 0.0
    %506 = vmatpush2.msra.mxu0 0.0
    %507 = vmatprep.subr.mxu0 0.0
    %508 = vmatpush2.msra.mxu0 0.0
    %509 = vmatprep.subr.mxu0 0.0
    %510 = vmatpush2.msra.mxu0 0.0
    %511 = vmatprep.subr.mxu0 0.0
    %512 = vmatpush2.msra.mxu0 0.0
    %513 = vmatprep.subr.mxu0 0.0
    %514 = vmatpush2.msra.mxu0 %v338
    %515 = vmatprep.subr.mxu0 0.0
    %516 = vmatpush2.msra.mxu0 %v333
    %517 = vmatprep.subr.mxu0 0.0
    %518 = vmatpush2.msra.mxu0 %v328
    %519 = vmatprep.subr.mxu0 0.0
    %520 = vmatpush2.msra.mxu0 %v323
    %521 = vmatprep.subr.mxu0 0.0
    %522 = vmatpush2.msra.mxu0 %v318
    %523 = vmatprep.subr.mxu0 0.0
    %524 = vmatpush2.msra.mxu0 %v313
    %525 = vmatprep.subr.mxu0 0.0
    %526 = vmatpush2.msra.mxu0 %v308
    %527 = vmatprep.subr.mxu0 0.0
    %528 = vmatpush2.msra.mxu0 %v303
    %529 = vmatprep.subr.mxu0 0.0
    %530 = vmatpush2.msra.mxu0 %v298
    %531 = vmatprep.mubr.f32.mxu0 %v393
    %532 = vmatmul.mubr.f32.gmra.mxu0 %v341
    %v533 = vpop.f32.mrf.mxu0
    %v534 = vadd.f32 0.0, %v533
    %v535 = vpop.f32.mrf.mxu0
    %536 = vmatprep.mubr.f32.mxu0 %v396
    %537 = vmatmul.mubr.f32.gmra.mxu0 %v343
    %v538 = vpop.f32.mrf.mxu0
    %v539 = vadd.f32 0.0, %v538
    %v540 = vpop.f32.mrf.mxu0
    %541 = vmatprep.mubr.f32.mxu0 %v399
    %542 = vmatmul.mubr.f32.gmra.mxu0 %v345
    %v543 = vpop.f32.mrf.mxu0
    %v544 = vadd.f32 0.0, %v543
    %v545 = vpop.f32.mrf.mxu0
    %546 = vmatprep.mubr.f32.mxu0 %v402
    %547 = vmatmul.mubr.f32.gmra.mxu0 %v347
    %v548 = vpop.f32.mrf.mxu0
    %v549 = vadd.f32 0.0, %v548
    %v550 = vpop.f32.mrf.mxu0
    %551 = vmatprep.mubr.f32.mxu0 %v405
    %552 = vmatmul.mubr.f32.gmra.mxu0 %v349
    %v553 = vpop.f32.mrf.mxu0
    %v554 = vadd.f32 0.0, %v553
    %v555 = vpop.f32.mrf.mxu0
    %556 = vmatprep.mubr.f32.mxu0 %v408
    %557 = vmatmul.mubr.f32.gmra.mxu0 %v351
    %v558 = vpop.f32.mrf.mxu0
    %v559 = vadd.f32 0.0, %v558
    %v560 = vpop.f32.mrf.mxu0
    %561 = vmatprep.mubr.f32.mxu0 %v411
    %562 = vmatmul.mubr.f32.gmra.mxu0 %v353
    %v563 = vpop.f32.mrf.mxu0
    %v564 = vadd.f32 0.0, %v563
    %v565 = vpop.f32.mrf.mxu0
    %566 = vmatprep.mubr.f32.mxu0 %v414
    %567 = vmatmul.mubr.f32.gmra.mxu0 %v355
    %v568 = vpop.f32.mrf.mxu0
    %v569 = vadd.f32 0.0, %v568
    %v570 = vpop.f32.mrf.mxu0
    %571 = vmatprep.mubr.f32.mxu0 %v417
    %572 = vmatmul.mubr.f32.gmra.mxu0 %v357
    %v573 = vpop.f32.mrf.mxu0
    %v574 = vadd.f32 0.0, %v573
    %v575 = vpop.f32.mrf.mxu0
    %576 = vmatprep.mubr.f32.mxu0 %v420
    %577 = vmatmul.mubr.f32.gmra.mxu0 %v359
    %v578 = vpop.f32.mrf.mxu0
    %v579 = vadd.f32 0.0, %v578
    %v580 = vpop.f32.mrf.mxu0
    %581 = vmatprep.mubr.f32.mxu0 %v423
    %582 = vmatmul.mubr.f32.gmra.mxu0 %v361
    %v583 = vpop.f32.mrf.mxu0
    %v584 = vadd.f32 0.0, %v583
    %v585 = vpop.f32.mrf.mxu0
    %586 = vmatprep.mubr.f32.mxu0 %v426
    %587 = vmatmul.mubr.f32.gmra.mxu0 %v363
    %v588 = vpop.f32.mrf.mxu0
    %v589 = vadd.f32 0.0, %v588
    %v590 = vpop.f32.mrf.mxu0
    %591 = vmatprep.mubr.f32.mxu0 %v429
    %592 = vmatmul.mubr.f32.gmra.mxu0 %v365
    %v593 = vpop.f32.mrf.mxu0
    %v594 = vadd.f32 0.0, %v593
    %v595 = vpop.f32.mrf.mxu0
    %596 = vmatprep.mubr.f32.mxu0 %v432
    %597 = vmatmul.mubr.f32.gmra.mxu0 %v367
    %v598 = vpop.f32.mrf.mxu0
    %v599 = vadd.f32 0.0, %v598
    %v600 = vpop.f32.mrf.mxu0
    %601 = vmatprep.mubr.f32.mxu0 %v435
    %602 = vmatmul.mubr.f32.gmra.mxu0 %v369
    %v603 = vpop.f32.mrf.mxu0
    %v604 = vadd.f32 0.0, %v603
    %v605 = vpop.f32.mrf.mxu0
    %606 = vmatprep.mubr.f32.mxu0 %v438
    %607 = vmatmul.mubr.f32.gmra.mxu0 %v371
    %v608 = vpop.f32.mrf.mxu0
    %v609 = vadd.f32 0.0, %v608
    %v610 = vpop.f32.mrf.mxu0
    %611 = vmatprep.mubr.f32.mxu0 %v441
    %612 = vmatmul.mubr.f32.gmra.mxu0 %v373
    %v613 = vpop.f32.mrf.mxu0
    %v614 = vadd.f32 0.0, %v613
    %v615 = vpop.f32.mrf.mxu0
    %616 = vmatprep.mubr.f32.mxu0 %v444
    %617 = vmatmul.mubr.f32.gmra.mxu0 %v375
    %v618 = vpop.f32.mrf.mxu0
    %v619 = vadd.f32 0.0, %v618
    %v620 = vpop.f32.mrf.mxu0
    %621 = vmatprep.mubr.f32.mxu0 %v447
    %622 = vmatmul.mubr.f32.gmra.mxu0 %v377
    %v623 = vpop.f32.mrf.mxu0
    %v624 = vadd.f32 0.0, %v623
    %v625 = vpop.f32.mrf.mxu0
    %626 = vmatprep.mubr.f32.mxu0 %v450
    %627 = vmatmul.mubr.f32.gmra.mxu0 %v379
    %v628 = vpop.f32.mrf.mxu0
    %v629 = vadd.f32 0.0, %v628
    %v630 = vpop.f32.mrf.mxu0
    %631 = vmatprep.mubr.f32.mxu0 %v453
    %632 = vmatmul.mubr.f32.gmra.mxu0 %v381
    %v633 = vpop.f32.mrf.mxu0
    %v634 = vadd.f32 0.0, %v633
    %v635 = vpop.f32.mrf.mxu0
    %636 = vmatprep.mubr.f32.mxu0 %v456
    %637 = vmatmul.mubr.f32.gmra.mxu0 %v383
    %v638 = vpop.f32.mrf.mxu0
    %v639 = vadd.f32 0.0, %v638
    %v640 = vpop.f32.mrf.mxu0
    %641 = vmatprep.mubr.f32.mxu0 %v459
    %642 = vmatmul.mubr.f32.gmra.mxu0 %v385
    %v643 = vpop.f32.mrf.mxu0
    %v644 = vadd.f32 0.0, %v643
    %v645 = vpop.f32.mrf.mxu0
    %646 = vmatprep.mubr.f32.mxu0 %v462
    %647 = vmatmul.mubr.f32.gmra.mxu0 %v387
    %v648 = vpop.f32.mrf.mxu0
    %v649 = vadd.f32 0.0, %v648
    %v650 = vpop.f32.mrf.mxu0
    %651 = vmatprep.mubr.f32.mxu0 %v465
    %652 = vmatmul.mubr.f32.gmra.mxu0 %v389
    %v653 = vpop.f32.mrf.mxu0
    %v654 = vadd.f32 0.0, %v653
    %v655 = vpop.f32.mrf.mxu0
    %656 = vdwg.mxu0
    %v657 = vmax.f32 %v534, 0.0
    %v658 = vmax.f32 %v539, 0.0
    %v659 = vmax.f32 %v544, 0.0
    %v660 = vmax.f32 %v549, 0.0
    %v661 = vmax.f32 %v554, 0.0
    %v662 = vmax.f32 %v559, 0.0
    %v663 = vmax.f32 %v564, 0.0
    %v664 = vmax.f32 %v569, 0.0
    %v665 = vmax.f32 %v574, 0.0
    %v666 = vmax.f32 %v579, 0.0
    %v667 = vmax.f32 %v584, 0.0
    %v668 = vmax.f32 %v589, 0.0
    %v669 = vmax.f32 %v594, 0.0
    %v670 = vmax.f32 %v599, 0.0
    %v671 = vmax.f32 %v604, 0.0
    %v672 = vmax.f32 %v609, 0.0
    %v673 = vmax.f32 %v614, 0.0
    %v674 = vmax.f32 %v619, 0.0
    %v675 = vmax.f32 %v624, 0.0
    %v676 = vmax.f32 %v629, 0.0
    %v677 = vmax.f32 %v634, 0.0
    %v678 = vmax.f32 %v639, 0.0
    %v679 = vmax.f32 %v644, 0.0
    %v680 = vmax.f32 %v649, 0.0
    %v681 = vmax.f32 %v654, 0.0
    %v682 = vld [vmem:[#allocation11] sm:$0xff]
    %v683 = vld [vmem:[#allocation11 + $0x8] sm:$0xff]
    %v684 = vld [vmem:[#allocation11 + $0x10] sm:$0xff]
    %v685 = vld [vmem:[#allocation11 + $0x18] sm:$0xff]
    %v686 = vld [vmem:[#allocation11 + $0x20] sm:$0xff]
    %v687 = vld [vmem:[#allocation11 + $0x28] sm:$0xff]
    %v688 = vld [vmem:[#allocation11 + $0x30] sm:$0xff]
    %v689 = vld [vmem:[#allocation11 + $0x38] sm:$0xff]
    %v690 = vld [vmem:[#allocation11 + $0x40] sm:$0xff]
    %v691 = vld [vmem:[#allocation11 + $0x48] sm:$0xff]
    %v692 = vld [vmem:[#allocation11 + $0x50] sm:$0xff]
    %v693 = vld [vmem:[#allocation11 + $0x58] sm:$0xff]
    %v694 = vld [vmem:[#allocation11 + $0x60] sm:$0xff]
    %v695 = vld [vmem:[#allocation11 + $0x68] sm:$0xff]
    %v696 = vld [vmem:[#allocation11 + $0x70] sm:$0xff]
    %v697 = vld [vmem:[#allocation11 + $0x78] sm:$0xff]
    %v698 = vld [vmem:[%s6] sm:$0x1]
    %v700 = vlaneseq
    %v701 = vshrl.u32 %v700, 7
    %v702 = vsub.s32 0, %v701
    %v703 = vrot.slane %v698, %v702
    %705 = vmatprep.subr.mxu0 0.0
    %706 = vmatpush1.msra.mxu0 %v697
    %707 = vmatprep.subr.mxu0 0.0
    %708 = vmatpush1.msra.mxu0 %v696
    %709 = vmatprep.subr.mxu0 0.0
    %710 = vmatpush1.msra.mxu0 %v695
    %711 = vmatprep.subr.mxu0 0.0
    %712 = vmatpush1.msra.mxu0 %v694
    %713 = vmatprep.subr.mxu0 0.0
    %714 = vmatpush1.msra.mxu0 %v693
    %715 = vmatprep.subr.mxu0 0.0
    %716 = vmatpush1.msra.mxu0 %v692
    %717 = vmatprep.subr.mxu0 0.0
    %718 = vmatpush1.msra.mxu0 %v691
    %719 = vmatprep.subr.mxu0 0.0
    %720 = vmatpush1.msra.mxu0 %v690
    %721 = vmatprep.subr.mxu0 0.0
    %722 = vmatpush1.msra.mxu0 %v689
    %723 = vmatprep.subr.mxu0 0.0
    %724 = vmatpush1.msra.mxu0 %v688
    %725 = vmatprep.subr.mxu0 0.0
    %726 = vmatpush1.msra.mxu0 %v687
    %727 = vmatprep.subr.mxu0 0.0
    %728 = vmatpush1.msra.mxu0 %v686
    %729 = vmatprep.subr.mxu0 0.0
    %730 = vmatpush1.msra.mxu0 %v685
    %731 = vmatprep.subr.mxu0 0.0
    %732 = vmatpush1.msra.mxu0 %v684
    %733 = vmatprep.subr.mxu0 0.0
    %734 = vmatpush1.msra.mxu0 %v683
    %735 = vmatprep.subr.mxu0 0.0
    %736 = vmatpush1.msra.mxu0 %v682
    %737 = vmatprep.subr.mxu0 0.0
    %738 = vmatpush2.msra.mxu0 0.0
    %739 = vmatprep.subr.mxu0 0.0
    %740 = vmatpush2.msra.mxu0 0.0
    %741 = vmatprep.subr.mxu0 0.0
    %742 = vmatpush2.msra.mxu0 0.0
    %743 = vmatprep.subr.mxu0 0.0
    %744 = vmatpush2.msra.mxu0 0.0
    %745 = vmatprep.subr.mxu0 0.0
    %746 = vmatpush2.msra.mxu0 0.0
    %747 = vmatprep.subr.mxu0 0.0
    %748 = vmatpush2.msra.mxu0 0.0
    %749 = vmatprep.subr.mxu0 0.0
    %750 = vmatpush2.msra.mxu0 0.0
    %751 = vmatprep.subr.mxu0 0.0
    %752 = vmatpush2.msra.mxu0 0.0
    %753 = vmatprep.subr.mxu0 0.0
    %754 = vmatpush2.msra.mxu0 0.0
    %755 = vmatprep.subr.mxu0 0.0
    %756 = vmatpush2.msra.mxu0 0.0
    %757 = vmatprep.subr.mxu0 0.0
    %758 = vmatpush2.msra.mxu0 0.0
    %759 = vmatprep.subr.mxu0 0.0
    %760 = vmatpush2.msra.mxu0 0.0
    %761 = vmatprep.subr.mxu0 0.0
    %762 = vmatpush2.msra.mxu0 0.0
    %763 = vmatprep.subr.mxu0 0.0
    %764 = vmatpush2.msra.mxu0 0.0
    %765 = vmatprep.subr.mxu0 0.0
    %766 = vmatpush2.msra.mxu0 0.0
    %767 = vmatprep.subr.mxu0 0.0
    %768 = vmatpush2.msra.mxu0 0.0
    %769 = vmatprep.mubr.f32.mxu0 0.0
    %770 = vmatmul.mubr.f32.gmra.mxu0 %v657
    %v771 = vpop.f32.mrf.mxu0
    %v772 = vadd.f32 %v703, %v771
    %v773 = vpop.f32.mrf.mxu0
    %774 = vmatprep.mubr.f32.mxu0 0.0
    %775 = vmatmul.mubr.f32.gmra.mxu0 %v658
    %v776 = vpop.f32.mrf.mxu0
    %v777 = vadd.f32 %v703, %v776
    %v778 = vpop.f32.mrf.mxu0
    %779 = vmatprep.mubr.f32.mxu0 0.0
    %780 = vmatmul.mubr.f32.gmra.mxu0 %v659
    %v781 = vpop.f32.mrf.mxu0
    %v782 = vadd.f32 %v703, %v781
    %v783 = vpop.f32.mrf.mxu0
    %784 = vmatprep.mubr.f32.mxu0 0.0
    %785 = vmatmul.mubr.f32.gmra.mxu0 %v660
    %v786 = vpop.f32.mrf.mxu0
    %v787 = vadd.f32 %v703, %v786
    %v788 = vpop.f32.mrf.mxu0
    %789 = vmatprep.mubr.f32.mxu0 0.0
    %790 = vmatmul.mubr.f32.gmra.mxu0 %v661
    %v791 = vpop.f32.mrf.mxu0
    %v792 = vadd.f32 %v703, %v791
    %v793 = vpop.f32.mrf.mxu0
    %794 = vmatprep.mubr.f32.mxu0 0.0
    %795 = vmatmul.mubr.f32.gmra.mxu0 %v662
    %v796 = vpop.f32.mrf.mxu0
    %v797 = vadd.f32 %v703, %v796
    %v798 = vpop.f32.mrf.mxu0
    %799 = vmatprep.mubr.f32.mxu0 0.0
    %800 = vmatmul.mubr.f32.gmra.mxu0 %v663
    %v801 = vpop.f32.mrf.mxu0
    %v802 = vadd.f32 %v703, %v801
    %v803 = vpop.f32.mrf.mxu0
    %804 = vmatprep.mubr.f32.mxu0 0.0
    %805 = vmatmul.mubr.f32.gmra.mxu0 %v664
    %v806 = vpop.f32.mrf.mxu0
    %v807 = vadd.f32 %v703, %v806
    %v808 = vpop.f32.mrf.mxu0
    %809 = vmatprep.mubr.f32.mxu0 0.0
    %810 = vmatmul.mubr.f32.gmra.mxu0 %v665
    %v811 = vpop.f32.mrf.mxu0
    %v812 = vadd.f32 %v703, %v811
    %v813 = vpop.f32.mrf.mxu0
    %814 = vmatprep.mubr.f32.mxu0 0.0
    %815 = vmatmul.mubr.f32.gmra.mxu0 %v666
    %v816 = vpop.f32.mrf.mxu0
    %v817 = vadd.f32 %v703, %v816
    %v818 = vpop.f32.mrf.mxu0
    %819 = vmatprep.mubr.f32.mxu0 0.0
    %820 = vmatmul.mubr.f32.gmra.mxu0 %v667
    %v821 = vpop.f32.mrf.mxu0
    %v822 = vadd.f32 %v703, %v821
    %v823 = vpop.f32.mrf.mxu0
    %824 = vmatprep.mubr.f32.mxu0 0.0
    %825 = vmatmul.mubr.f32.gmra.mxu0 %v668
    %v826 = vpop.f32.mrf.mxu0
    %v827 = vadd.f32 %v703, %v826
    %v828 = vpop.f32.mrf.mxu0
    %829 = vmatprep.mubr.f32.mxu0 0.0
    %830 = vmatmul.mubr.f32.gmra.mxu0 %v669
    %v831 = vpop.f32.mrf.mxu0
    %v832 = vadd.f32 %v703, %v831
    %v833 = vpop.f32.mrf.mxu0
    %834 = vmatprep.mubr.f32.mxu0 0.0
    %835 = vmatmul.mubr.f32.gmra.mxu0 %v670
    %v836 = vpop.f32.mrf.mxu0
    %v837 = vadd.f32 %v703, %v836
    %v838 = vpop.f32.mrf.mxu0
    %839 = vmatprep.mubr.f32.mxu0 0.0
    %840 = vmatmul.mubr.f32.gmra.mxu0 %v671
    %v841 = vpop.f32.mrf.mxu0
    %v842 = vadd.f32 %v703, %v841
    %v843 = vpop.f32.mrf.mxu0
    %844 = vmatprep.mubr.f32.mxu0 0.0
    %845 = vmatmul.mubr.f32.gmra.mxu0 %v672
    %v846 = vpop.f32.mrf.mxu0
    %v847 = vadd.f32 %v703, %v846
    %v848 = vpop.f32.mrf.mxu0
    %849 = vmatprep.mubr.f32.mxu0 0.0
    %850 = vmatmul.mubr.f32.gmra.mxu0 %v673
    %v851 = vpop.f32.mrf.mxu0
    %v852 = vadd.f32 %v703, %v851
    %v853 = vpop.f32.mrf.mxu0
    %854 = vmatprep.mubr.f32.mxu0 0.0
    %855 = vmatmul.mubr.f32.gmra.mxu0 %v674
    %v856 = vpop.f32.mrf.mxu0
    %v857 = vadd.f32 %v703, %v856
    %v858 = vpop.f32.mrf.mxu0
    %859 = vmatprep.mubr.f32.mxu0 0.0
    %860 = vmatmul.mubr.f32.gmra.mxu0 %v675
    %v861 = vpop.f32.mrf.mxu0
    %v862 = vadd.f32 %v703, %v861
    %v863 = vpop.f32.mrf.mxu0
    %864 = vmatprep.mubr.f32.mxu0 0.0
    %865 = vmatmul.mubr.f32.gmra.mxu0 %v676
    %v866 = vpop.f32.mrf.mxu0
    %v867 = vadd.f32 %v703, %v866
    %v868 = vpop.f32.mrf.mxu0
    %869 = vmatprep.mubr.f32.mxu0 0.0
    %870 = vmatmul.mubr.f32.gmra.mxu0 %v677
    %v871 = vpop.f32.mrf.mxu0
    %v872 = vadd.f32 %v703, %v871
    %v873 = vpop.f32.mrf.mxu0
    %874 = vmatprep.mubr.f32.mxu0 0.0
    %875 = vmatmul.mubr.f32.gmra.mxu0 %v678
    %v876 = vpop.f32.mrf.mxu0
    %v877 = vadd.f32 %v703, %v876
    %v878 = vpop.f32.mrf.mxu0
    %879 = vmatprep.mubr.f32.mxu0 0.0
    %880 = vmatmul.mubr.f32.gmra.mxu0 %v679
    %v881 = vpop.f32.mrf.mxu0
    %v882 = vadd.f32 %v703, %v881
    %v883 = vpop.f32.mrf.mxu0
    %884 = vmatprep.mubr.f32.mxu0 0.0
    %885 = vmatmul.mubr.f32.gmra.mxu0 %v680
    %v886 = vpop.f32.mrf.mxu0
    %v887 = vadd.f32 %v703, %v886
    %v888 = vpop.f32.mrf.mxu0
    %889 = vmatprep.mubr.f32.mxu0 0.0
    %890 = vmatmul.mubr.f32.gmra.mxu0 %v681
    %v891 = vpop.f32.mrf.mxu0
    %v892 = vadd.f32 %v703, %v891
    %v893 = vpop.f32.mrf.mxu0
    %894 = vdwg.mxu0
    %v895 = vld [vmem:[#allocation8] sm:$0xff]
    %v896 = vld [vmem:[#allocation8 + $0x8] sm:$0xff]
    %v897 = vld [vmem:[#allocation8 + $0x10] sm:$0xff]
    %v898 = vld [vmem:[#allocation8 + $0x18] sm:$0xff]
    %v900 = vsel %vm391, %v896, 0
    %v903 = vsel %vm391, %v898, 0
    %905 = vmatprep.subr.mxu0 0.0
    %906 = vmatpush1.msra.mxu0 %v847
    %907 = vmatprep.subr.mxu0 0.0
    %908 = vmatpush1.msra.mxu0 %v842
    %909 = vmatprep.subr.mxu0 0.0
    %910 = vmatpush1.msra.mxu0 %v837
    %911 = vmatprep.subr.mxu0 0.0
    %912 = vmatpush1.msra.mxu0 %v832
    %913 = vmatprep.subr.mxu0 0.0
    %914 = vmatpush1.msra.mxu0 %v827
    %915 = vmatprep.subr.mxu0 0.0
    %916 = vmatpush1.msra.mxu0 %v822
    %917 = vmatprep.subr.mxu0 0.0
    %918 = vmatpush1.msra.mxu0 %v817
    %919 = vmatprep.subr.mxu0 0.0
    %920 = vmatpush1.msra.mxu0 %v812
    %921 = vmatprep.subr.mxu0 0.0
    %922 = vmatpush1.msra.mxu0 %v807
    %923 = vmatprep.subr.mxu0 0.0
    %924 = vmatpush1.msra.mxu0 %v802
    %925 = vmatprep.subr.mxu0 0.0
    %926 = vmatpush1.msra.mxu0 %v797
    %927 = vmatprep.subr.mxu0 0.0
    %928 = vmatpush1.msra.mxu0 %v792
    %929 = vmatprep.subr.mxu0 0.0
    %930 = vmatpush1.msra.mxu0 %v787
    %931 = vmatprep.subr.mxu0 0.0
    %932 = vmatpush1.msra.mxu0 %v782
    %933 = vmatprep.subr.mxu0 0.0
    %934 = vmatpush1.msra.mxu0 %v777
    %935 = vmatprep.subr.mxu0 0.0
    %936 = vmatpush1.msra.mxu0 %v772
    %937 = vmatprep.subr.mxu0 0.0
    %938 = vmatpush2.msra.mxu0 0.0
    %939 = vmatprep.subr.mxu0 0.0
    %940 = vmatpush2.msra.mxu0 0.0
    %941 = vmatprep.subr.mxu0 0.0
    %942 = vmatpush2.msra.mxu0 0.0
    %943 = vmatprep.subr.mxu0 0.0
    %944 = vmatpush2.msra.mxu0 0.0
    %945 = vmatprep.subr.mxu0 0.0
    %946 = vmatpush2.msra.mxu0 0.0
    %947 = vmatprep.subr.mxu0 0.0
    %948 = vmatpush2.msra.mxu0 0.0
    %949 = vmatprep.subr.mxu0 0.0
    %950 = vmatpush2.msra.mxu0 0.0
    %951 = vmatprep.subr.mxu0 0.0
    %952 = vmatpush2.msra.mxu0 %v892
    %953 = vmatprep.subr.mxu0 0.0
    %954 = vmatpush2.msra.mxu0 %v887
    %955 = vmatprep.subr.mxu0 0.0
    %956 = vmatpush2.msra.mxu0 %v882
    %957 = vmatprep.subr.mxu0 0.0
    %958 = vmatpush2.msra.mxu0 %v877
    %959 = vmatprep.subr.mxu0 0.0
    %960 = vmatpush2.msra.mxu0 %v872
    %961 = vmatprep.subr.mxu0 0.0
    %962 = vmatpush2.msra.mxu0 %v867
    %963 = vmatprep.subr.mxu0 0.0
    %964 = vmatpush2.msra.mxu0 %v862
    %965 = vmatprep.subr.mxu0 0.0
    %966 = vmatpush2.msra.mxu0 %v857
    %967 = vmatprep.subr.mxu0 0.0
    %968 = vmatpush2.msra.mxu0 %v852
    %969 = vmatprep.mubr.f32.mxu0 %v900
    %970 = vmatmul.mubr.f32.gmra.mxu0 %v895
    %v971 = vpop.f32.mrf.mxu0
    %v972 = vadd.f32 0.0, %v971
    %v973 = vpop.f32.mrf.mxu0
    %974 = vmatprep.mubr.f32.mxu0 %v903
    %975 = vmatmul.mubr.f32.gmra.mxu0 %v897
    %v976 = vpop.f32.mrf.mxu0
    %v977 = vadd.f32 0.0, %v976
    %v978 = vpop.f32.mrf.mxu0
    %979 = vdwg.mxu0
    %v980 = vmax.f32 %v972, 0.0
    %v981 = vmax.f32 %v977, 0.0
    %v982 = vmax.f32 %v980, %v981
    %v983 = vrot.slane %v982, 4
    %v984 = vmax.f32 %v982, %v983
    %v985 = vrot.slane %v984, 2
    %v986 = vmax.f32 %v984, %v985
    %v987 = vrot.slane %v986, 1
    %v988 = vmax.f32 %v986, %v987
    %v989 = vld [vmem:[%s7] sm:$0x1]
    %v990 = vmul.f32 %v988, %v989
    %vm991 = vcmask 1040384
    %v992 = vsel %vm991, %v990, 0.0
    %993 = vadd.xlane.f32.xlu0 %v992
    %v994 = vpop.xlane.xlu0 %993
    %v995 = vld [vmem:[#allocation2] sm:$0x1]
    %v996 = vadd.f32 %v994, %v995
    %v997 = vsub.f32 0.0, %v996
    %v998 = vmul.f32 %v997, 1.442695
    %v999 = vpow.pop %v998
    %v1000 = vadd.f32 %v999, 1.0
    %v1001 = vrcp.pop %v1000
    %v1002 = vmul.f32 1.0, %v1001
    %vm1003 = vcmask 0
    %1004 = vst.msk [vmem:[#allocation12] sm:$0x1] %vm1003, %v1002
    // Predicated region
    $region58: #{tpu_custom_call.1} parent=1 // pred_check
      _
    $region59: #{tpu_custom_call.1} parent=1 // pred_check_branch
      %1006 = sbr.rel (0) target = $region61
    $region60: #{tpu_custom_call.1} parent=1 // pred_region
      %s1008 = ssub.s32 16, 16
      %1009 = vsyncadd [#allocation5], %s1008
      %s1011 = sshll.u32 [#allocation12], 4
      %s1012 = int_to_ptr.vmem [resolvable:$true] %s1011
      %1014 = dma.vmem_to_hbm [thread:$0]  %s1012, 16, %s9, [#allocation5]
    $region61: #{tpu_custom_call.1} parent=1 // pred_fallthru
      _
    // Predicated region
    $region62: #{tpu_custom_call.1} parent=1 // pred_check
      _
    $region63: #{tpu_custom_call.1} parent=1 // pred_check_branch
      %1016 = sbr.rel (0) target = $region65
    $region64: #{tpu_custom_call.1} parent=1 // pred_region
      %1017 = dma.done [#allocation5], 16
    $region65: #{tpu_custom_call.1} parent=1 // pred_fallthru
      _
    %1018 = vsyncpa [#allocation4], 1
    %1019 = vsyncpa [#allocation7], 1
    %1020 = vsyncpa [#allocation10], 1
    %1021 = vsyncpa [#allocation5], 1

</llo_original>
